<compile_context>
chip_gen: v5e
topology: v5e:2x2
jax: 0.10.0
libtpu: 0.0.40
codegen_flags: <defaults>
</compile_context>

<pallas_src>
import functools

import jax
import jax.numpy as jnp
from jax import lax
from jax.experimental import pallas as pl
from jax.experimental.pallas import tpu as pltpu

P_DROP = 0.15


def _dropout(x, p, seed_u32, salt):
    """Inverted dropout.

    Counter-based hash PRNG (murmur3-style fmix32) computed on the VPU entirely
    in the integer domain -- no pltpu.prng_* primitives, so the kernel also runs
    under interpret mode.  The keep decision is a single integer compare
    (keep-prob threshold), no int->float convert / shift / scale chain.
    """
    thresh = jnp.int32(int(p * (1 << 31)))                       # drop if bits < thresh
    r = lax.broadcasted_iota(jnp.uint32, x.shape, 0)
    c = lax.broadcasted_iota(jnp.uint32, x.shape, 1)
    bits = (r * jnp.uint32(0x01000193)
            + c
            + seed_u32
            + jnp.uint32(salt) * jnp.uint32(0x85EBCA6B))
    bits = (bits ^ (bits >> 16)) * jnp.uint32(0x7FEB352D)
    bits = (bits ^ (bits >> 15)) * jnp.uint32(0x846CA68B)
    bits = bits ^ (bits >> 16)
    bits31 = (bits >> 1).astype(jnp.int32)                       # uniform in [0, 2^31)
    keep = bits31 >= thresh
    return jnp.where(keep, x * (1.0 / (1.0 - p)), jnp.zeros_like(x))


def mlp_kernel(seed_ref,                       # scalar-prefetch (SMEM)
               x_ref, w1_ref, b1_ref, w2_ref, b2_ref,
               w3_ref, b3_ref, w4_ref, b4_ref,
               o_ref, *, training):
    # Mix the batch-tile index into the seed so each tile draws a fresh mask.
    seed = (seed_ref[0].astype(jnp.uint32)
            + pl.program_id(0).astype(jnp.uint32) * jnp.uint32(0x9E3779B9))

    x = x_ref[...]                                               # (13, TB)

    h = jnp.dot(w1_ref[...], x, preferred_element_type=jnp.float32) + b1_ref[...]
    h = jnp.maximum(h, 0.0)
    if training:
        h = _dropout(h, P_DROP, seed, 1)

    h = jnp.dot(w2_ref[...], h, preferred_element_type=jnp.float32) + b2_ref[...]
    h = jnp.maximum(h, 0.0)
    if training:
        h = _dropout(h, P_DROP, seed, 2)

    h = jnp.dot(w3_ref[...], h, preferred_element_type=jnp.float32) + b3_ref[...]
    h = jnp.maximum(h, 0.0)
    if training:
        h = _dropout(h, P_DROP, seed, 3)

    z = jnp.dot(w4_ref[...], h, preferred_element_type=jnp.float32) + b4_ref[...]
    o_ref[...] = jax.nn.sigmoid(z)                               # lane-dense (1, TB)


def mlp_forward(x, params, seed=0, training=True, max_tile=512):
    """params = [(w1,b1),...,(w4,b4)], w_i (out,in) PyTorch layout, b_i (out,1)."""
    B = x.shape[0]
    x_t = x.T.astype(jnp.float32)                                # (13, B)

    if B > max_tile:
        TB = max_tile                                            # multiple of 128
        Bp = pl.cdiv(B, TB) * TB
        if Bp > B:
            x_t = jnp.pad(x_t, ((0, 0), (0, Bp - B)))
    else:
        TB = B                                                   # single full tile
        Bp = B
    num_tiles = Bp // TB

    flat = [x_t]
    for w, b in params:
        flat.extend([w, b])

    # x tiled over batch (lane axis); weights/biases grid-invariant & VMEM-resident.
    in_specs = [pl.BlockSpec((13, TB), lambda i, s: (0, i))]
    for w, b in params:
        in_specs.append(pl.BlockSpec(w.shape, lambda i, s: (0, 0)))
        in_specs.append(pl.BlockSpec(b.shape, lambda i, s: (0, 0)))

    grid_spec = pltpu.PrefetchScalarGridSpec(
        num_scalar_prefetch=1,
        grid=(num_tiles,),
        in_specs=in_specs,
        out_specs=pl.BlockSpec((1, TB), lambda i, s: (0, i)),
    )

    flops = 2 * Bp * (13 * 10 + 10 * 7 + 7 * 4 + 4 * 1)
    bytes_accessed = 4 * (Bp * 13 + Bp
                          + sum(w.size + b.size for w, b in params))

    seed_arr = jnp.array([seed], dtype=jnp.int32)

    out = pl.pallas_call(
        functools.partial(mlp_kernel, training=training),
        out_shape=jax.ShapeDtypeStruct((1, Bp), jnp.float32),
        grid_spec=grid_spec,
        compiler_params=pltpu.CompilerParams(
            dimension_semantics=("parallel",)),      # shard batch tiles across TCs (v7x)
        cost_estimate=pl.CostEstimate(
            flops=flops, transcendentals=Bp, bytes_accessed=bytes_accessed),
    )(seed_arr, *flat)

    return out[:, :B].T                                          # (B, 1)


def init_params(key):
    """Deterministic init matching PyTorch Linear default (uniform +/- 1/sqrt(fan_in)).
    Weights stored in PyTorch (out, in) layout, biases as (out, 1)."""
    dims = [(13, 10), (10, 7), (7, 4), (4, 1)]
    params = []
    for fan_in, fan_out in dims:
        key, kw, kb = jax.random.split(key, 3)
        bound = 1.0 / (fan_in ** 0.5)
        w = jax.random.uniform(kw, (fan_out, fan_in), jnp.float32, -bound, bound)
        b = jax.random.uniform(kb, (fan_out, 1), jnp.float32, -bound, bound)
        params.append((w, b))
    return params


if __name__ == "__main__":
    key = jax.random.PRNGKey(0)
    key, kx, kp = jax.random.split(key, 3)

    B = 8
    x = jax.random.normal(kx, (B, 13), dtype=jnp.float32)
    params = init_params(kp)

    # training=True matches F.dropout's default (dropout active) in the reference.
    y = mlp_forward(x, params, seed=0, training=True)
    y = jax.block_until_ready(y)

    assert y.shape == (B, 1)
    assert bool(jnp.all((y >= 0.0) & (y <= 1.0)))
    print("KERNEL_OK")
</pallas_src>

<mosaic_0001>
module attributes {stable_mosaic.version = 11 : i64} {
  func.func @mlp_kernel(%arg0: i32, %arg1: memref<1xi32, #tpu.memory_space<smem>>, %arg2: memref<13x8xf32, #tpu.memory_space<vmem>>, %arg3: memref<10x13xf32, #tpu.memory_space<vmem>>, %arg4: memref<10x1xf32, #tpu.memory_space<vmem>>, %arg5: memref<7x10xf32, #tpu.memory_space<vmem>>, %arg6: memref<7x1xf32, #tpu.memory_space<vmem>>, %arg7: memref<4x7xf32, #tpu.memory_space<vmem>>, %arg8: memref<4x1xf32, #tpu.memory_space<vmem>>, %arg9: memref<1x4xf32, #tpu.memory_space<vmem>>, %arg10: memref<1x1xf32, #tpu.memory_space<vmem>>, %arg11: memref<1x8xf32, #tpu.memory_space<vmem>>) attributes {dimension_semantics = [#tpu.dimension_semantics<parallel>], iteration_bounds = array<i64: 1>, scalar_prefetch = 1 : i64, scratch_operands = 0 : i64, tpu.core_type = #tpu.core_type<tc>, window_params = [{transform_indices = @transform_0, window_bounds = array<i64: 13, 8>}, {pipeline_mode = #tpu.pipeline_mode<synchronous>, transform_indices = @transform_1, window_bounds = array<i64: 10, 13>}, {pipeline_mode = #tpu.pipeline_mode<synchronous>, transform_indices = @transform_2, window_bounds = array<i64: 10, 1>}, {pipeline_mode = #tpu.pipeline_mode<synchronous>, transform_indices = @transform_3, window_bounds = array<i64: 7, 10>}, {pipeline_mode = #tpu.pipeline_mode<synchronous>, transform_indices = @transform_4, window_bounds = array<i64: 7, 1>}, {pipeline_mode = #tpu.pipeline_mode<synchronous>, transform_indices = @transform_5, window_bounds = array<i64: 4, 7>}, {pipeline_mode = #tpu.pipeline_mode<synchronous>, transform_indices = @transform_6, window_bounds = array<i64: 4, 1>}, {pipeline_mode = #tpu.pipeline_mode<synchronous>, transform_indices = @transform_7, window_bounds = array<i64: 1, 4>}, {pipeline_mode = #tpu.pipeline_mode<synchronous>, transform_indices = @transform_8, window_bounds = array<i64: 1, 1>}, {transform_indices = @transform_9, window_bounds = array<i64: 1, 8>}]} {
    %c0 = arith.constant 0 : index
    %0 = memref.load %arg1[%c0] : memref<1xi32, #tpu.memory_space<smem>>
    %c-1640531527_i32 = arith.constant -1640531527 : i32
    %1 = arith.muli %arg0, %c-1640531527_i32 : i32
    %2 = arith.addi %0, %1 : i32
    %c0_0 = arith.constant 0 : index
    %c0_1 = arith.constant 0 : index
    %3 = vector.load %arg2[%c0_0, %c0_1] : memref<13x8xf32, #tpu.memory_space<vmem>>, vector<13x8xf32>
    %c0_2 = arith.constant 0 : index
    %c0_3 = arith.constant 0 : index
    %4 = vector.load %arg3[%c0_2, %c0_3] : memref<10x13xf32, #tpu.memory_space<vmem>>, vector<10x13xf32>
    %cst = arith.constant dense<0.000000e+00> : vector<10x8xf32>
    %5 = tpu.matmul %4, %3, %cst {dimension_numbers = #tpu.dot_dimension_numbers<[1], [0], [0], [1], [0, 0, 1, 1], [], []>} : vector<10x13xf32>, vector<13x8xf32>, vector<10x8xf32> -> vector<10x8xf32>
    %c0_4 = arith.constant 0 : index
    %c0_5 = arith.constant 0 : index
    %6 = vector.load %arg4[%c0_4, %c0_5] : memref<10x1xf32, #tpu.memory_space<vmem>>, vector<10x1xf32>
    %7 = vector.broadcast %6 : vector<10x1xf32> to vector<10x8xf32>
    %8 = arith.addf %5, %7 : vector<10x8xf32>
    %cst_6 = arith.constant 0.000000e+00 : f32
    %9 = vector.broadcast %cst_6 : f32 to vector<10x8xf32>
    %10 = arith.maximumf %8, %9 : vector<10x8xf32>
    %11 = tpu.iota {dimensions = array<i32: 0>} : vector<10x8xi32>
    %12 = tpu.iota {dimensions = array<i32: 1>} : vector<10x8xi32>
    %c16777619_i32 = arith.constant 16777619 : i32
    %13 = vector.broadcast %c16777619_i32 : i32 to vector<10x8xi32>
    %14 = arith.muli %11, %13 : vector<10x8xi32>
    %15 = arith.addi %14, %12 : vector<10x8xi32>
    %16 = vector.broadcast %2 : i32 to vector<10x8xi32>
    %17 = arith.addi %15, %16 : vector<10x8xi32>
    %c1_i32 = arith.constant 1 : i32
    %c-2048144789_i32 = arith.constant -2048144789 : i32
    %18 = arith.muli %c1_i32, %c-2048144789_i32 : i32
    %19 = vector.broadcast %18 : i32 to vector<10x8xi32>
    %20 = arith.addi %17, %19 : vector<10x8xi32>
    %c16_i32 = arith.constant 16 : i32
    %21 = vector.broadcast %c16_i32 : i32 to vector<10x8xi32>
    %22 = arith.shrui %20, %21 : vector<10x8xi32>
    %23 = arith.xori %20, %22 : vector<10x8xi32>
    %c2146121005_i32 = arith.constant 2146121005 : i32
    %24 = vector.broadcast %c2146121005_i32 : i32 to vector<10x8xi32>
    %25 = arith.muli %23, %24 : vector<10x8xi32>
    %c15_i32 = arith.constant 15 : i32
    %26 = vector.broadcast %c15_i32 : i32 to vector<10x8xi32>
    %27 = arith.shrui %25, %26 : vector<10x8xi32>
    %28 = arith.xori %25, %27 : vector<10x8xi32>
    %c-2073254261_i32 = arith.constant -2073254261 : i32
    %29 = vector.broadcast %c-2073254261_i32 : i32 to vector<10x8xi32>
    %30 = arith.muli %28, %29 : vector<10x8xi32>
    %c16_i32_7 = arith.constant 16 : i32
    %31 = vector.broadcast %c16_i32_7 : i32 to vector<10x8xi32>
    %32 = arith.shrui %30, %31 : vector<10x8xi32>
    %33 = arith.xori %30, %32 : vector<10x8xi32>
    %c1_i32_8 = arith.constant 1 : i32
    %34 = vector.broadcast %c1_i32_8 : i32 to vector<10x8xi32>
    %35 = arith.shrui %33, %34 : vector<10x8xi32>
    %c322122547_i32 = arith.constant 322122547 : i32
    %36 = vector.broadcast %c322122547_i32 : i32 to vector<10x8xi32>
    %37 = arith.cmpi sge, %35, %36 : vector<10x8xi32>
    %cst_9 = arith.constant 1.17647064 : f32
    %38 = vector.broadcast %cst_9 : f32 to vector<10x8xf32>
    %39 = arith.mulf %10, %38 : vector<10x8xf32>
    %cst_10 = arith.constant 0.000000e+00 : f32
    %40 = vector.broadcast %cst_10 : f32 to vector<10x8xf32>
    %41 = arith.select %37, %39, %40 : vector<10x8xi1>, vector<10x8xf32>
    %c0_11 = arith.constant 0 : index
    %c0_12 = arith.constant 0 : index
    %42 = vector.load %arg5[%c0_11, %c0_12] : memref<7x10xf32, #tpu.memory_space<vmem>>, vector<7x10xf32>
    %cst_13 = arith.constant dense<0.000000e+00> : vector<7x8xf32>
    %43 = tpu.matmul %42, %41, %cst_13 {dimension_numbers = #tpu.dot_dimension_numbers<[1], [0], [0], [1], [0, 0, 1, 1], [], []>} : vector<7x10xf32>, vector<10x8xf32>, vector<7x8xf32> -> vector<7x8xf32>
    %c0_14 = arith.constant 0 : index
    %c0_15 = arith.constant 0 : index
    %44 = vector.load %arg6[%c0_14, %c0_15] : memref<7x1xf32, #tpu.memory_space<vmem>>, vector<7x1xf32>
    %45 = vector.broadcast %44 : vector<7x1xf32> to vector<7x8xf32>
    %46 = arith.addf %43, %45 : vector<7x8xf32>
    %cst_16 = arith.constant 0.000000e+00 : f32
    %47 = vector.broadcast %cst_16 : f32 to vector<7x8xf32>
    %48 = arith.maximumf %46, %47 : vector<7x8xf32>
    %49 = tpu.iota {dimensions = array<i32: 0>} : vector<7x8xi32>
    %50 = tpu.iota {dimensions = array<i32: 1>} : vector<7x8xi32>
    %c16777619_i32_17 = arith.constant 16777619 : i32
    %51 = vector.broadcast %c16777619_i32_17 : i32 to vector<7x8xi32>
    %52 = arith.muli %49, %51 : vector<7x8xi32>
    %53 = arith.addi %52, %50 : vector<7x8xi32>
    %54 = vector.broadcast %2 : i32 to vector<7x8xi32>
    %55 = arith.addi %53, %54 : vector<7x8xi32>
    %c2_i32 = arith.constant 2 : i32
    %c-2048144789_i32_18 = arith.constant -2048144789 : i32
    %56 = arith.muli %c2_i32, %c-2048144789_i32_18 : i32
    %57 = vector.broadcast %56 : i32 to vector<7x8xi32>
    %58 = arith.addi %55, %57 : vector<7x8xi32>
    %c16_i32_19 = arith.constant 16 : i32
    %59 = vector.broadcast %c16_i32_19 : i32 to vector<7x8xi32>
    %60 = arith.shrui %58, %59 : vector<7x8xi32>
    %61 = arith.xori %58, %60 : vector<7x8xi32>
    %c2146121005_i32_20 = arith.constant 2146121005 : i32
    %62 = vector.broadcast %c2146121005_i32_20 : i32 to vector<7x8xi32>
    %63 = arith.muli %61, %62 : vector<7x8xi32>
    %c15_i32_21 = arith.constant 15 : i32
    %64 = vector.broadcast %c15_i32_21 : i32 to vector<7x8xi32>
    %65 = arith.shrui %63, %64 : vector<7x8xi32>
    %66 = arith.xori %63, %65 : vector<7x8xi32>
    %c-2073254261_i32_22 = arith.constant -2073254261 : i32
    %67 = vector.broadcast %c-2073254261_i32_22 : i32 to vector<7x8xi32>
    %68 = arith.muli %66, %67 : vector<7x8xi32>
    %c16_i32_23 = arith.constant 16 : i32
    %69 = vector.broadcast %c16_i32_23 : i32 to vector<7x8xi32>
    %70 = arith.shrui %68, %69 : vector<7x8xi32>
    %71 = arith.xori %68, %70 : vector<7x8xi32>
    %c1_i32_24 = arith.constant 1 : i32
    %72 = vector.broadcast %c1_i32_24 : i32 to vector<7x8xi32>
    %73 = arith.shrui %71, %72 : vector<7x8xi32>
    %c322122547_i32_25 = arith.constant 322122547 : i32
    %74 = vector.broadcast %c322122547_i32_25 : i32 to vector<7x8xi32>
    %75 = arith.cmpi sge, %73, %74 : vector<7x8xi32>
    %cst_26 = arith.constant 1.17647064 : f32
    %76 = vector.broadcast %cst_26 : f32 to vector<7x8xf32>
    %77 = arith.mulf %48, %76 : vector<7x8xf32>
    %cst_27 = arith.constant 0.000000e+00 : f32
    %78 = vector.broadcast %cst_27 : f32 to vector<7x8xf32>
    %79 = arith.select %75, %77, %78 : vector<7x8xi1>, vector<7x8xf32>
    %c0_28 = arith.constant 0 : index
    %c0_29 = arith.constant 0 : index
    %80 = vector.load %arg7[%c0_28, %c0_29] : memref<4x7xf32, #tpu.memory_space<vmem>>, vector<4x7xf32>
    %cst_30 = arith.constant dense<0.000000e+00> : vector<4x8xf32>
    %81 = tpu.matmul %80, %79, %cst_30 {dimension_numbers = #tpu.dot_dimension_numbers<[1], [0], [0], [1], [0, 0, 1, 1], [], []>} : vector<4x7xf32>, vector<7x8xf32>, vector<4x8xf32> -> vector<4x8xf32>
    %c0_31 = arith.constant 0 : index
    %c0_32 = arith.constant 0 : index
    %82 = vector.load %arg8[%c0_31, %c0_32] : memref<4x1xf32, #tpu.memory_space<vmem>>, vector<4x1xf32>
    %83 = vector.broadcast %82 : vector<4x1xf32> to vector<4x8xf32>
    %84 = arith.addf %81, %83 : vector<4x8xf32>
    %cst_33 = arith.constant 0.000000e+00 : f32
    %85 = vector.broadcast %cst_33 : f32 to vector<4x8xf32>
    %86 = arith.maximumf %84, %85 : vector<4x8xf32>
    %87 = tpu.iota {dimensions = array<i32: 0>} : vector<4x8xi32>
    %88 = tpu.iota {dimensions = array<i32: 1>} : vector<4x8xi32>
    %c16777619_i32_34 = arith.constant 16777619 : i32
    %89 = vector.broadcast %c16777619_i32_34 : i32 to vector<4x8xi32>
    %90 = arith.muli %87, %89 : vector<4x8xi32>
    %91 = arith.addi %90, %88 : vector<4x8xi32>
    %92 = vector.broadcast %2 : i32 to vector<4x8xi32>
    %93 = arith.addi %91, %92 : vector<4x8xi32>
    %c3_i32 = arith.constant 3 : i32
    %c-2048144789_i32_35 = arith.constant -2048144789 : i32
    %94 = arith.muli %c3_i32, %c-2048144789_i32_35 : i32
    %95 = vector.broadcast %94 : i32 to vector<4x8xi32>
    %96 = arith.addi %93, %95 : vector<4x8xi32>
    %c16_i32_36 = arith.constant 16 : i32
    %97 = vector.broadcast %c16_i32_36 : i32 to vector<4x8xi32>
    %98 = arith.shrui %96, %97 : vector<4x8xi32>
    %99 = arith.xori %96, %98 : vector<4x8xi32>
    %c2146121005_i32_37 = arith.constant 2146121005 : i32
    %100 = vector.broadcast %c2146121005_i32_37 : i32 to vector<4x8xi32>
    %101 = arith.muli %99, %100 : vector<4x8xi32>
    %c15_i32_38 = arith.constant 15 : i32
    %102 = vector.broadcast %c15_i32_38 : i32 to vector<4x8xi32>
    %103 = arith.shrui %101, %102 : vector<4x8xi32>
    %104 = arith.xori %101, %103 : vector<4x8xi32>
    %c-2073254261_i32_39 = arith.constant -2073254261 : i32
    %105 = vector.broadcast %c-2073254261_i32_39 : i32 to vector<4x8xi32>
    %106 = arith.muli %104, %105 : vector<4x8xi32>
    %c16_i32_40 = arith.constant 16 : i32
    %107 = vector.broadcast %c16_i32_40 : i32 to vector<4x8xi32>
    %108 = arith.shrui %106, %107 : vector<4x8xi32>
    %109 = arith.xori %106, %108 : vector<4x8xi32>
    %c1_i32_41 = arith.constant 1 : i32
    %110 = vector.broadcast %c1_i32_41 : i32 to vector<4x8xi32>
    %111 = arith.shrui %109, %110 : vector<4x8xi32>
    %c322122547_i32_42 = arith.constant 322122547 : i32
    %112 = vector.broadcast %c322122547_i32_42 : i32 to vector<4x8xi32>
    %113 = arith.cmpi sge, %111, %112 : vector<4x8xi32>
    %cst_43 = arith.constant 1.17647064 : f32
    %114 = vector.broadcast %cst_43 : f32 to vector<4x8xf32>
    %115 = arith.mulf %86, %114 : vector<4x8xf32>
    %cst_44 = arith.constant 0.000000e+00 : f32
    %116 = vector.broadcast %cst_44 : f32 to vector<4x8xf32>
    %117 = arith.select %113, %115, %116 : vector<4x8xi1>, vector<4x8xf32>
    %c0_45 = arith.constant 0 : index
    %c0_46 = arith.constant 0 : index
    %118 = vector.load %arg9[%c0_45, %c0_46] : memref<1x4xf32, #tpu.memory_space<vmem>>, vector<1x4xf32>
    %cst_47 = arith.constant dense<0.000000e+00> : vector<1x8xf32>
    %119 = tpu.matmul %118, %117, %cst_47 {dimension_numbers = #tpu.dot_dimension_numbers<[1], [0], [0], [1], [0, 0, 1, 1], [], []>} : vector<1x4xf32>, vector<4x8xf32>, vector<1x8xf32> -> vector<1x8xf32>
    %c0_48 = arith.constant 0 : index
    %c0_49 = arith.constant 0 : index
    %120 = vector.load %arg10[%c0_48, %c0_49] : memref<1x1xf32, #tpu.memory_space<vmem>>, vector<1x1xf32>
    %121 = vector.broadcast %120 : vector<1x1xf32> to vector<1x8xf32>
    %122 = arith.addf %119, %121 : vector<1x8xf32>
    %123 = arith.negf %122 : vector<1x8xf32>
    %124 = math.exp %123 : vector<1x8xf32>
    %cst_50 = arith.constant 1.000000e+00 : f32
    %125 = vector.broadcast %cst_50 : f32 to vector<1x8xf32>
    %126 = arith.addf %125, %124 : vector<1x8xf32>
    %127 = arith.divf %125, %126 : vector<1x8xf32>
    %c0_51 = arith.constant 0 : index
    %c0_52 = arith.constant 0 : index
    %128 = vector.load %arg11[%c0_51, %c0_52] : memref<1x8xf32, #tpu.memory_space<vmem>>, vector<1x8xf32>
    tpu.vector_store %arg11[%c0_51, %c0_52], %127 {strides = array<i32>} : memref<1x8xf32, #tpu.memory_space<vmem>>, vector<1x8xf32>,
    return
  }
  func.func @transform_0(%arg0: i32, %arg1: memref<1xi32, #tpu.memory_space<smem>>) -> (i32, i32) {
    %c0_i32 = arith.constant 0 : i32
    %c0_i32_0 = arith.constant 0 : i32
    return %c0_i32, %arg0 : i32, i32
  }
  func.func @transform_1(%arg0: i32, %arg1: memref<1xi32, #tpu.memory_space<smem>>) -> (i32, i32) {
    %c0_i32 = arith.constant 0 : i32
    %c0_i32_0 = arith.constant 0 : i32
    %c0_i32_1 = arith.constant 0 : i32
    return %c0_i32, %c0_i32_0 : i32, i32
  }
  func.func @transform_2(%arg0: i32, %arg1: memref<1xi32, #tpu.memory_space<smem>>) -> (i32, i32) {
    %c0_i32 = arith.constant 0 : i32
    %c0_i32_0 = arith.constant 0 : i32
    %c0_i32_1 = arith.constant 0 : i32
    return %c0_i32, %c0_i32_0 : i32, i32
  }
  func.func @transform_3(%arg0: i32, %arg1: memref<1xi32, #tpu.memory_space<smem>>) -> (i32, i32) {
    %c0_i32 = arith.constant 0 : i32
    %c0_i32_0 = arith.constant 0 : i32
    %c0_i32_1 = arith.constant 0 : i32
    return %c0_i32, %c0_i32_0 : i32, i32
  }
  func.func @transform_4(%arg0: i32, %arg1: memref<1xi32, #tpu.memory_space<smem>>) -> (i32, i32) {
    %c0_i32 = arith.constant 0 : i32
    %c0_i32_0 = arith.constant 0 : i32
    %c0_i32_1 = arith.constant 0 : i32
    return %c0_i32, %c0_i32_0 : i32, i32
  }
  func.func @transform_5(%arg0: i32, %arg1: memref<1xi32, #tpu.memory_space<smem>>) -> (i32, i32) {
    %c0_i32 = arith.constant 0 : i32
    %c0_i32_0 = arith.constant 0 : i32
    %c0_i32_1 = arith.constant 0 : i32
    return %c0_i32, %c0_i32_0 : i32, i32
  }
  func.func @transform_6(%arg0: i32, %arg1: memref<1xi32, #tpu.memory_space<smem>>) -> (i32, i32) {
    %c0_i32 = arith.constant 0 : i32
    %c0_i32_0 = arith.constant 0 : i32
    %c0_i32_1 = arith.constant 0 : i32
    return %c0_i32, %c0_i32_0 : i32, i32
  }
  func.func @transform_7(%arg0: i32, %arg1: memref<1xi32, #tpu.memory_space<smem>>) -> (i32, i32) {
    %c0_i32 = arith.constant 0 : i32
    %c0_i32_0 = arith.constant 0 : i32
    %c0_i32_1 = arith.constant 0 : i32
    return %c0_i32, %c0_i32_0 : i32, i32
  }
  func.func @transform_8(%arg0: i32, %arg1: memref<1xi32, #tpu.memory_space<smem>>) -> (i32, i32) {
    %c0_i32 = arith.constant 0 : i32
    %c0_i32_0 = arith.constant 0 : i32
    %c0_i32_1 = arith.constant 0 : i32
    return %c0_i32, %c0_i32_0 : i32, i32
  }
  func.func @transform_9(%arg0: i32, %arg1: memref<1xi32, #tpu.memory_space<smem>>) -> (i32, i32) {
    %c0_i32 = arith.constant 0 : i32
    %c0_i32_0 = arith.constant 0 : i32
    return %c0_i32, %arg0 : i32, i32
  }
}

</mosaic_0001>

<llo_original>
// kernel: tpu_custom_call.1
$region0: #{tpu_custom_call.1}
  #allocation0 [shape = 'u32[]', space=smem, size = 0x4, offset = 0x4, fixed_abs, tag = 'smem constant byte address 0x4 - core index']
  #allocation1 [shape = 'u32[72,128]{1,0:T(1,128)}', space=vmem, size = 0x9000, scoped, tag = 'internal scratch']
  #allocation2 [shape = 's32[1]{0}', space=sflag, size = 0x4, scoped, tag = 'scoped memory for tpu_custom_call.1']
  #allocation3 [shape = 's32[1]{0:T(128)S(6)}', space=smem, size = 0x200, scoped, tag = 'prefetched SMEM operand 0']
  #allocation4 [shape = 'f32[1,1]{1,0:T(1,128)S(1)}', space=vmem, size = 0x200, scoped, tag = 'scoped memory for tpu_custom_call.1']
  %s0 = inlined_call_operand.<no memory space> [shape: s32[1], index: 0, kind: input, shape index: {}]
  %s1 = inlined_call_operand.vmem [shape: f32[13,8], index: 1, kind: input, shape index: {}]
  %s2 = inlined_call_operand.vmem [shape: f32[10,13], index: 2, kind: input, shape index: {}]
  %s3 = inlined_call_operand.vmem [shape: f32[10,1], index: 3, kind: input, shape index: {}]
  %s4 = inlined_call_operand.vmem [shape: f32[7,10], index: 4, kind: input, shape index: {}]
  %s5 = inlined_call_operand.vmem [shape: f32[7,1], index: 5, kind: input, shape index: {}]
  %s6 = inlined_call_operand.vmem [shape: f32[4,7], index: 6, kind: input, shape index: {}]
  %s7 = inlined_call_operand.vmem [shape: f32[4,1], index: 7, kind: input, shape index: {}]
  %s8 = inlined_call_operand.vmem [shape: f32[1,4], index: 8, kind: input, shape index: {}]
  %s9 = inlined_call_operand.<no memory space> [shape: f32[1,1], index: 9, kind: input, shape index: {}]
  %s10 = inlined_call_operand.hbm [shape: f32[1,8], index: 10, kind: output, shape index: {}]
  %s11 = sld [smem:[#allocation0]]
  $region46: #{tpu_custom_call.1} parent=0
    _
  %s13 = ssub.s32 1, %s11
  %s14 = scalar_select 0, %s13, %s11
  %15 = sst [smem:[#allocation3]] %s0
  %v16 = vstv %s9
  %17 = vst [vmem:[#allocation4] sm:$0x1] %v16
  $region1: #{tpu_custom_call.1} parent=0
    #allocation5 [shape = 'u8[512]{0}', space=vmem, size = 0x400, scoped, tag = 'output window, operand 0, single buffered']
    #allocation6 [shape = 's32[1]{0}', space=sflag, size = 0x4, scoped, tag = 'scoped memory for tpu_custom_call.1']
    %18 = vsyncpa [#allocation6], 0
    // Predicated region
    $region2: #{tpu_custom_call.1} parent=1 // pred_check
      _
    $region3: #{tpu_custom_call.1} parent=1 // pred_check_branch
      %20 = sbr.rel (0) target = $region5
    $region4: #{tpu_custom_call.1} parent=1 // pred_region
      _
    $region5: #{tpu_custom_call.1} parent=1 // pred_fallthru
      _
    // Predicated region
    $region6: #{tpu_custom_call.1} parent=1 // pred_check
      _
    $region7: #{tpu_custom_call.1} parent=1 // pred_check_branch
      %22 = sbr.rel (0) target = $region9
    $region8: #{tpu_custom_call.1} parent=1 // pred_region
      _
    $region9: #{tpu_custom_call.1} parent=1 // pred_fallthru
      _
    // Predicated region
    $region10: #{tpu_custom_call.1} parent=1 // pred_check
      _
    $region11: #{tpu_custom_call.1} parent=1 // pred_check_branch
      %24 = sbr.rel (0) target = $region13
    $region12: #{tpu_custom_call.1} parent=1 // pred_region
      _
    $region13: #{tpu_custom_call.1} parent=1 // pred_fallthru
      _
    // Predicated region
    $region14: #{tpu_custom_call.1} parent=1 // pred_check
      _
    $region15: #{tpu_custom_call.1} parent=1 // pred_check_branch
      %26 = sbr.rel (0) target = $region17
    $region16: #{tpu_custom_call.1} parent=1 // pred_region
      _
    $region17: #{tpu_custom_call.1} parent=1 // pred_fallthru
      _
    // Predicated region
    $region18: #{tpu_custom_call.1} parent=1 // pred_check
      _
    $region19: #{tpu_custom_call.1} parent=1 // pred_check_branch
      %28 = sbr.rel (0) target = $region21
    $region20: #{tpu_custom_call.1} parent=1 // pred_region
      _
    $region21: #{tpu_custom_call.1} parent=1 // pred_fallthru
      _
    // Predicated region
    $region22: #{tpu_custom_call.1} parent=1 // pred_check
      _
    $region23: #{tpu_custom_call.1} parent=1 // pred_check_branch
      %30 = sbr.rel (0) target = $region25
    $region24: #{tpu_custom_call.1} parent=1 // pred_region
      _
    $region25: #{tpu_custom_call.1} parent=1 // pred_fallthru
      _
    // Predicated region
    $region26: #{tpu_custom_call.1} parent=1 // pred_check
      _
    $region27: #{tpu_custom_call.1} parent=1 // pred_check_branch
      %32 = sbr.rel (0) target = $region29
    $region28: #{tpu_custom_call.1} parent=1 // pred_region
      _
    $region29: #{tpu_custom_call.1} parent=1 // pred_fallthru
      _
    // Predicated region
    $region30: #{tpu_custom_call.1} parent=1 // pred_check
      _
    $region31: #{tpu_custom_call.1} parent=1 // pred_check_branch
      %34 = sbr.rel (0) target = $region33
    $region32: #{tpu_custom_call.1} parent=1 // pred_region
      _
    $region33: #{tpu_custom_call.1} parent=1 // pred_fallthru
      _
    // Predicated region
    $region34: #{tpu_custom_call.1} parent=1 // pred_check
      _
    $region35: #{tpu_custom_call.1} parent=1 // pred_check_branch
      %36 = sbr.rel (0) target = $region37
    $region36: #{tpu_custom_call.1} parent=1 // pred_region
      _
    $region37: #{tpu_custom_call.1} parent=1 // pred_fallthru
      _
    %s37 = sld [smem:[#allocation3]]
    %s38 = smul.u32 0, 2654435769
    %s39 = sadd.s32 %s37, %s38
    %v40 = vld [vmem:[%s1] sm:$0xff]
    %v41 = vld [vmem:[%s1 + $0x8] sm:$0x1f]
    %v42 = vld [vmem:[%s2] sm:$0xff]
    %v43 = vld [vmem:[%s2 + $0x8] sm:$0x3]
    %v44 = vld [vmem:[%s3] sm:$0xff]
    %v45 = vld [vmem:[%s3 + $0x8] sm:$0x3]
    %47 = vset.pattern.permute.xlu0 0
    %48 = vperm.xlu0 %47, %v44
    %v49 = vpop.permute.xlu0 %48
    %52 = vset.pattern.permute.xlu0 0
    %53 = vperm.xlu0 %52, %v45
    %v54 = vpop.permute.xlu0 %53
    %vm56 = vcmask 105472
    %v58 = vsel %vm56, %v42, 0
    %v61 = vsel %vm56, %v43, 0
    %vm63 = vcmask 1044480
    %v65 = vsel %vm63, %v41, 0
    %67 = vmatpush.msra.mxu0 0.0
    %68 = vmatpush.msra.mxu0 0.0
    %69 = vmatpush.msra.mxu0 0.0
    %70 = vmatpush.msra.mxu0 0.0
    %71 = vmatpush.msra.mxu0 0.0
    %72 = vmatpush.msra.mxu0 0.0
    %73 = vmatpush.msra.mxu0 0.0
    %74 = vmatpush.msra.mxu0 0.0
    %75 = vmatpush.msra.mxu0 0.0
    %76 = vmatpush.msra.mxu0 0.0
    %77 = vmatpush.msra.mxu0 0.0
    %78 = vmatpush.msra.mxu0 0.0
    %79 = vmatpush.msra.mxu0 0.0
    %80 = vmatpush.msra.mxu0 0.0
    %81 = vmatpush.msra.mxu0 %v65
    %82 = vmatpush.msra.mxu0 %v40
    %83 = vmatmul.f32.gmra.mxu0 %v58
    %v84 = vpop.f32.mrf.mxu0
    %v85 = vadd.f32 %v49, %v84
    %86 = vmatmul.f32.gmra.mxu0 %v61
    %v87 = vpop.f32.mrf.mxu0
    %v88 = vadd.f32 %v54, %v87
    %89 = vdwg.mxu0
    %v90 = vmax.f32 %v85, 0.0
    %v91 = vmax.f32 %v88, 0.0
    %v92 = vlaneseq
    %v93 = vshrl.u32 %v92, 7
    %v94 = vadd.s32 %v93, 8
    %v95 = vlaneseq
    %v96 = vand.u32 %v95, 127
    %v97 = vmul.u32 %v93, 16777619
    %v98 = vmul.u32 %v94, 16777619
    %v99 = vadd.s32 %v97, %v96
    %v100 = vadd.s32 %v98, %v96
    %v101 = vstv %s39
    %v102 = vadd.s32 %v99, %v101
    %v103 = vadd.s32 %v100, %v101
    %v104 = vadd.s32 %v102, 2246822507
    %v105 = vadd.s32 %v103, 2246822507
    %v106 = vshrl.u32 %v104, 16
    %v107 = vshrl.u32 %v105, 16
    %v108 = vxor.u32 %v104, %v106
    %v109 = vxor.u32 %v105, %v107
    %v110 = vmul.u32 %v108, 2146121005
    %v111 = vmul.u32 %v109, 2146121005
    %v112 = vshrl.u32 %v110, 15
    %v113 = vshrl.u32 %v111, 15
    %v114 = vxor.u32 %v110, %v112
    %v115 = vxor.u32 %v111, %v113
    %v116 = vmul.u32 %v114, 2221713035
    %v117 = vmul.u32 %v115, 2221713035
    %v118 = vshrl.u32 %v116, 16
    %v119 = vshrl.u32 %v117, 16
    %v120 = vxor.u32 %v116, %v118
    %v121 = vxor.u32 %v117, %v119
    %v122 = vshrl.u32 %v120, 1
    %v123 = vshrl.u32 %v121, 1
    %vm124 = vcmp.ge.s32.totalorder %v122, 322122547
    %vm125 = vcmp.ge.s32.totalorder %v123, 322122547
    %v126 = vmul.f32 %v90, 1.1764706
    %v127 = vmul.f32 %v91, 1.1764706
    %v128 = vsel %vm124, %v126, 0.0
    %v129 = vsel %vm125, %v127, 0.0
    %v130 = vld [vmem:[%s4] sm:$0x7f]
    %v131 = vld [vmem:[%s5] sm:$0x7f]
    %133 = vset.pattern.permute.xlu0 0
    %134 = vperm.xlu0 %133, %v131
    %v135 = vpop.permute.xlu0 %134
    %vm137 = vcmask 80896
    %v139 = vsel %vm137, %v130, 0
    %vm141 = vcmask 1041408
    %v143 = vsel %vm141, %v129, 0
    %145 = vmatpush.msra.mxu0 0.0
    %146 = vmatpush.msra.mxu0 0.0
    %147 = vmatpush.msra.mxu0 0.0
    %148 = vmatpush.msra.mxu0 0.0
    %149 = vmatpush.msra.mxu0 0.0
    %150 = vmatpush.msra.mxu0 0.0
    %151 = vmatpush.msra.mxu0 0.0
    %152 = vmatpush.msra.mxu0 0.0
    %153 = vmatpush.msra.mxu0 0.0
    %154 = vmatpush.msra.mxu0 0.0
    %155 = vmatpush.msra.mxu0 0.0
    %156 = vmatpush.msra.mxu0 0.0
    %157 = vmatpush.msra.mxu0 0.0
    %158 = vmatpush.msra.mxu0 0.0
    %159 = vmatpush.msra.mxu0 %v143
    %160 = vmatpush.msra.mxu0 %v128
    %161 = vmatmul.f32.gmra.mxu0 %v139
    %v162 = vpop.f32.mrf.mxu0
    %v163 = vadd.f32 %v135, %v162
    %164 = vdwg.mxu0
    %v165 = vmax.f32 %v163, 0.0
    %v166 = vadd.s32 %v102, 198677718
    %v167 = vshrl.u32 %v166, 16
    %v168 = vxor.u32 %v166, %v167
    %v169 = vmul.u32 %v168, 2146121005
    %v170 = vshrl.u32 %v169, 15
    %v171 = vxor.u32 %v169, %v170
    %v172 = vmul.u32 %v171, 2221713035
    %v173 = vshrl.u32 %v172, 16
    %v174 = vxor.u32 %v172, %v173
    %v175 = vshrl.u32 %v174, 1
    %vm176 = vcmp.ge.s32.totalorder %v175, 322122547
    %v177 = vmul.f32 %v165, 1.1764706
    %v178 = vsel %vm176, %v177, 0.0
    %v179 = vld [vmem:[%s6] sm:$0xf]
    %v180 = vld [vmem:[%s7] sm:$0xf]
    %182 = vset.pattern.permute.xlu0 0
    %183 = vperm.xlu0 %182, %v180
    %v184 = vpop.permute.xlu0 %183
    %vm186 = vcmask 56320
    %v188 = vsel %vm186, %v179, 0
    %vm190 = vcmask 1046528
    %v192 = vsel %vm190, %v178, 0
    %194 = vmatpush.msra.mxu0 0.0
    %195 = vmatpush.msra.mxu0 0.0
    %196 = vmatpush.msra.mxu0 0.0
    %197 = vmatpush.msra.mxu0 0.0
    %198 = vmatpush.msra.mxu0 0.0
    %199 = vmatpush.msra.mxu0 0.0
    %200 = vmatpush.msra.mxu0 0.0
    %201 = vmatpush.msra.mxu0 0.0
    %202 = vmatpush.msra.mxu0 0.0
    %203 = vmatpush.msra.mxu0 0.0
    %204 = vmatpush.msra.mxu0 0.0
    %205 = vmatpush.msra.mxu0 0.0
    %206 = vmatpush.msra.mxu0 0.0
    %207 = vmatpush.msra.mxu0 0.0
    %208 = vmatpush.msra.mxu0 0.0
    %209 = vmatpush.msra.mxu0 %v192
    %210 = vmatmul.f32.gmra.mxu0 %v188
    %v211 = vpop.f32.mrf.mxu0
    %v212 = vadd.f32 %v184, %v211
    %213 = vdwg.mxu0
    %v214 = vmax.f32 %v212, 0.0
    %v215 = vadd.s32 %v102, 2445500225
    %v216 = vshrl.u32 %v215, 16
    %v217 = vxor.u32 %v215, %v216
    %v218 = vmul.u32 %v217, 2146121005
    %v219 = vshrl.u32 %v218, 15
    %v220 = vxor.u32 %v218, %v219
    %v221 = vmul.u32 %v220, 2221713035
    %v222 = vshrl.u32 %v221, 16
    %v223 = vxor.u32 %v221, %v222
    %v224 = vshrl.u32 %v223, 1
    %vm225 = vcmp.ge.s32.totalorder %v224, 322122547
    %v226 = vmul.f32 %v214, 1.1764706
    %v227 = vsel %vm225, %v226, 0.0
    %v228 = vld [vmem:[%s8] sm:$0x1]
    %v229 = vld [vmem:[#allocation4] sm:$0x1]
    %231 = vset.pattern.permute.xlu0 0
    %232 = vperm.xlu0 %231, %v229
    %v233 = vpop.permute.xlu0 %232
    %v235 = vperm.slane %v233, 0
    %vm236 = vcmask 31744
    %v238 = vsel %vm236, %v228, 0
    %vm240 = vcmask 1043456
    %v242 = vsel %vm240, %v227, 0
    %244 = vmatpush.msra.mxu0 0.0
    %245 = vmatpush.msra.mxu0 0.0
    %246 = vmatpush.msra.mxu0 0.0
    %247 = vmatpush.msra.mxu0 0.0
    %248 = vmatpush.msra.mxu0 0.0
    %249 = vmatpush.msra.mxu0 0.0
    %250 = vmatpush.msra.mxu0 0.0
    %251 = vmatpush.msra.mxu0 0.0
    %252 = vmatpush.msra.mxu0 0.0
    %253 = vmatpush.msra.mxu0 0.0
    %254 = vmatpush.msra.mxu0 0.0
    %255 = vmatpush.msra.mxu0 0.0
    %256 = vmatpush.msra.mxu0 0.0
    %257 = vmatpush.msra.mxu0 0.0
    %258 = vmatpush.msra.mxu0 0.0
    %259 = vmatpush.msra.mxu0 %v242
    %260 = vmatmul.f32.gmra.mxu0 %v238
    %v261 = vpop.f32.mrf.mxu0
    %v262 = vadd.f32 %v235, %v261
    %263 = vdwg.mxu0
    %v264 = vxor.u32 %v262, 2147483648
    %v265 = vmul.f32 %v264, 1.442695
    %v266 = vpow.pop %v265
    %v267 = vadd.f32 %v266, 1.0
    %v268 = vrcp.pop %v267
    %v269 = vmul.f32 %v267, %v268
    %v270 = vsub.f32 1.0, %v269
    %v271 = vmul.f32 %v268, %v270
    %v272 = vadd.f32 %v268, %v271
    %vm273 = vweird.f32 %v267
    %vm274 = vweird.f32 %v268
    %vm275 = vmor %vm273, %vm274
    %v276 = vsel %vm275, %v268, %v272
    %v277 = vand.u32 2147483647, %v267
    %vm278 = vcmp.eq.f32.partialorder %v277, 8.507059e+37
    %v279 = vand.u32 %v267, 2147483648
    %v280 = vor.u32 1.1754944e-38, %v279
    %v281 = vsel %vm278, %v280, %v276
    %v282 = vmul.f32 1.0, %v281
    %vm283 = vcmask 57344
    %284 = vst.msk [vmem:[#allocation5] sm:$0x1] %vm283, %v282
    // Predicated region
    $region38: #{tpu_custom_call.1} parent=1 // pred_check
      _
    $region39: #{tpu_custom_call.1} parent=1 // pred_check_branch
      %286 = sbr.rel (0) target = $region41
    $region40: #{tpu_custom_call.1} parent=1 // pred_region
      %288 = vsyncadd [#allocation6], 0
      %s290 = sshll.u32 [#allocation5], 4
      %s291 = int_to_ptr.vmem [resolvable:$true] %s290
      %s292 = sshll.u32 %s10, 4
      %s293 = int_to_ptr.hbm [resolvable:$true] %s292
      %295 = dma.vmem_to_hbm [thread:$0]  %s291, 16, %s293, [#allocation6]
    $region41: #{tpu_custom_call.1} parent=1 // pred_fallthru
      _
    // Predicated region
    $region42: #{tpu_custom_call.1} parent=1 // pred_check
      _
    $region43: #{tpu_custom_call.1} parent=1 // pred_check_branch
      %297 = sbr.rel (0) target = $region45
    $region44: #{tpu_custom_call.1} parent=1 // pred_region
      %299 = dma.done [#allocation6], 16
    $region45: #{tpu_custom_call.1} parent=1 // pred_fallthru
      _
    %300 = vsyncpa [#allocation6], 1

</llo_original>
